<compile_context>
chip_gen: v7x
topology: tpu7x:2x2x1
jax: 0.10.0
libtpu: 0.0.40
codegen_flags: <defaults>
</compile_context>

<pallas_src>
import numpy as np
import jax
import jax.numpy as jnp
from jax.experimental import pallas as pl
from jax.experimental.pallas import tpu as pltpu

LATENT = 256          # latent_size in the PyTorch module
MAX_TEXT_LEN = 256    # self.max_text_len


def _gelu_tanh(x):
    # tanh-approximate GELU; |err| vs exact erf-GELU <= ~3e-3, tanh -> EUP.
    c0 = jnp.float32(0.7978845608028654)   # sqrt(2/pi)
    c1 = jnp.float32(0.044715)
    return 0.5 * x * (1.0 + jnp.tanh(c0 * (x + c1 * x * x * x)))


def fsod_adaptor_kernel(x_ref, w1_ref, b1_ref, w2_ref, b2_ref,
                        txt_ref, msk_ref, o_ref):
    # x_ref:   (BB, NQP, D)   f32   queries for BB batch elements
    # w1/w2:   (D, D)         bf16  MLP weights, input-major (y = x @ W + b)
    # b1/b2:   (1, D)         f32
    # txt_ref: (BB, NTP, D)   bf16  text tokens, zero-padded past Nt (NTP%128==0)
    # msk_ref: (BB, 1, NTP)   f32   1.0 where token valid, else 0.0
    # o_ref:   (BB, NQP, T)   f32/bf16  per-query logits over max_text_len
    BB, NQP, D = x_ref.shape
    NTP = txt_ref.shape[1]
    T = o_ref.shape[2]
    neg_inf = jnp.float32(-jnp.inf)

    # ---- MLP: Linear -> GELU -> Linear over all BB*NQP rows at once
    #      (bf16 MXU operands, f32 accumulate, f32 element-wise math) -------
    x = x_ref[...].reshape(BB * NQP, D)
    h = jnp.dot(x.astype(jnp.bfloat16), w1_ref[...],
                preferred_element_type=jnp.float32) + b1_ref[...]
    h = _gelu_tanh(h)
    y = jnp.dot(h.astype(jnp.bfloat16), w2_ref[...],
                preferred_element_type=jnp.float32) + b2_ref[...]
    y = y.reshape(BB, NQP, D).astype(jnp.bfloat16)

    # ---- ContrastiveEmbed: batched y @ text^T over the NTP (128-aligned)
    #      text columns, masked_fill(-inf) ----------------------------------
    logits = jnp.einsum('bqd,btd->bqt', y, txt_ref[...],
                        preferred_element_type=jnp.float32)       # (BB,NQP,NTP)
    masked = jnp.where(msk_ref[...] > 0.5, logits, neg_inf)

    # Both stores below are full 128-lane-aligned (NTP % 128 == 0) -> dense vst.
    o_ref[:, :, 0:NTP] = masked.astype(o_ref.dtype)
    if NTP < T:
        o_ref[:, :, NTP:T] = jnp.full((BB, NQP, T - NTP), neg_inf, o_ref.dtype)


def _auto_batch_block(B, NQP, NTP, D, out_itemsize,
                      target_rows=256, vmem_budget_bytes=8 * 1024 * 1024):
    """Pick BB (divisor of B): feed >= target_rows query rows per step into the
    MLP matmuls, keep grid >= 2 steps when possible (v7x has 2 TCs), and keep
    the double-buffered per-step block footprint under vmem_budget_bytes."""
    per_elem = (NQP * D * 4                        # embeds block, f32
                + NQP * MAX_TEXT_LEN * out_itemsize  # output block
                + NTP * D * 2                      # text block, bf16
                + 8 * max(NTP, 128) * 4)           # mask block (layout-padded)
    divisors = [d for d in range(1, B + 1) if B % d == 0]
    fits = [d for d in divisors if 2 * d * per_elem <= vmem_budget_bytes] or [1]
    pref = [d for d in fits if (B // d) >= 2] or fits
    hit = [d for d in pref if d * NQP >= target_rows]
    return min(hit) if hit else max(pref)


def fsod_adaptor(embeds, w1, b1, w2, b2, encoded_text, text_token_mask,
                 *, batch_block=None, out_dtype=jnp.float32):
    """embeds: (B, Nq, 256) f32; encoded_text: (B, Nt, 256); text_token_mask:
    (B, Nt) bool.  Returns (B, Nq, 256) logits (-inf where masked/padded)."""
    B, Nq, D = embeds.shape
    _, Nt, _ = encoded_text.shape
    T = MAX_TEXT_LEN
    assert D == LATENT and Nt <= T

    if Nt == 0:   # degenerate: every column is masked / padding
        return jnp.full((B, Nq, T), -jnp.inf, out_dtype)

    NQP = -(-Nq // 16) * 16           # bf16 sublane multiple for query rows
    NTP = min(T, -(-Nt // 128) * 128)  # lane/MXU-column aligned text columns

    out_itemsize = np.dtype(out_dtype).itemsize
    if batch_block is None:
        BB = _auto_batch_block(B, NQP, NTP, D, out_itemsize)
    else:
        BB = batch_block
        assert B % BB == 0

    x = embeds.astype(jnp.float32)
    if NQP != Nq:
        x = jnp.pad(x, ((0, 0), (0, NQP - Nq), (0, 0)))

    # Text padded to NTP; mask covers both ~text_token_mask and the [Nt:NTP)
    # padding rows, so padded-but-invalid tokens never leak.
    txt = jnp.zeros((B, NTP, D), jnp.bfloat16)
    txt = txt.at[:, :Nt, :].set(encoded_text.astype(jnp.bfloat16))
    valid = jnp.zeros((B, 1, NTP), jnp.float32)
    valid = valid.at[:, 0, :Nt].set(text_token_mask.astype(jnp.float32))

    w1b = w1.astype(jnp.bfloat16)
    w2b = w2.astype(jnp.bfloat16)
    b1r = b1.reshape(1, D).astype(jnp.float32)
    b2r = b2.reshape(1, D).astype(jnp.float32)

    cost = pl.CostEstimate(
        flops=int(B * NQP * D * (4 * D + 2 * NTP)),
        transcendentals=int(B * NQP * D),
        bytes_accessed=int(x.size * 4 + w1b.size * 2 + w2b.size * 2
                           + b1r.size * 4 + b2r.size * 4
                           + txt.size * 2 + valid.size * 4
                           + B * NQP * T * out_itemsize),
    )

    out = pl.pallas_call(
        fsod_adaptor_kernel,
        out_shape=jax.ShapeDtypeStruct((B, NQP, T), out_dtype),
        grid_spec=pltpu.PrefetchScalarGridSpec(
            num_scalar_prefetch=0,
            grid=(B // BB,),
            in_specs=[
                pl.BlockSpec((BB, NQP, D), lambda b: (b, 0, 0)),   # embeds f32
                pl.BlockSpec((D, D),       lambda b: (0, 0)),      # W1 bf16
                pl.BlockSpec((1, D),       lambda b: (0, 0)),      # b1 f32
                pl.BlockSpec((D, D),       lambda b: (0, 0)),      # W2 bf16
                pl.BlockSpec((1, D),       lambda b: (0, 0)),      # b2 f32
                pl.BlockSpec((BB, NTP, D), lambda b: (b, 0, 0)),   # text bf16
                pl.BlockSpec((BB, 1, NTP), lambda b: (b, 0, 0)),   # mask f32
            ],
            out_specs=pl.BlockSpec((BB, NQP, T), lambda b: (b, 0, 0)),
        ),
        compiler_params=pltpu.CompilerParams(
            dimension_semantics=("parallel",),
            vmem_limit_bytes=32 * 1024 * 1024),
        cost_estimate=cost,
    )(x, w1b, b1r, w2b, b2r, txt, valid)

    return out[:, :Nq, :] if NQP != Nq else out


# ---------------------------------------------------------------------------
# References for the self-test.
# ---------------------------------------------------------------------------
def reference_exact(embeds, w1, b1, w2, b2, encoded_text, text_token_mask):
    # Mirrors the PyTorch forward exactly (f32, erf-based nn.GELU()).
    hi = jax.lax.Precision.HIGHEST
    h = jnp.dot(embeds, w1, precision=hi) + b1
    h = 0.5 * h * (1.0 + jax.scipy.special.erf(h / jnp.float32(2.0) ** 0.5))
    y = jnp.dot(h, w2, precision=hi) + b2
    res = jnp.einsum('bqd,btd->bqt', y, encoded_text, precision=hi)
    res = jnp.where(text_token_mask[:, None, :], res, -jnp.inf)
    B, Nq, Nt = res.shape
    out = jnp.full((B, Nq, MAX_TEXT_LEN), -jnp.inf, jnp.float32)
    return out.at[:, :, :Nt].set(res)


def reference_bf16(embeds, w1, b1, w2, b2, encoded_text, text_token_mask):
    # Same math with bf16-rounded matmul operands + tanh GELU (what the kernel
    # computes, modulo f32 accumulation order).
    hi = jax.lax.Precision.HIGHEST
    bf = lambda a: a.astype(jnp.bfloat16).astype(jnp.float32)
    h = jnp.dot(bf(embeds), bf(w1), precision=hi) + b1
    h = _gelu_tanh(h)
    y = jnp.dot(bf(h), bf(w2), precision=hi) + b2
    res = jnp.einsum('bqd,btd->bqt', bf(y), bf(encoded_text), precision=hi)
    res = jnp.where(text_token_mask[:, None, :], res, -jnp.inf)
    B, Nq, Nt = res.shape
    out = jnp.full((B, Nq, MAX_TEXT_LEN), -jnp.inf, jnp.float32)
    return out.at[:, :, :Nt].set(res)


if __name__ == "__main__":
    D = LATENT
    key = jax.random.PRNGKey(0)
    kw = jax.random.split(key, 4)

    # Deterministic parameter init (xavier_uniform_ for dim>1 params, Linear
    # default uniform for biases).  Weights stored input-major: y = x @ W + b.
    xav = (6.0 / (D + D)) ** 0.5
    bbound = 1.0 / (D ** 0.5)
    w1 = jax.random.uniform(kw[0], (D, D), jnp.float32, -xav, xav)
    w2 = jax.random.uniform(kw[1], (D, D), jnp.float32, -xav, xav)
    b1 = jax.random.uniform(kw[2], (D,), jnp.float32, -bbound, bbound)
    b2 = jax.random.uniform(kw[3], (D,), jnp.float32, -bbound, bbound)

    def run_case(seed, B, Nq, Nt, lengths, holes):
        ks = jax.random.split(jax.random.PRNGKey(seed), 2)
        embeds = jax.random.normal(ks[0], (B, Nq, D), jnp.float32)
        encoded_text = jax.random.normal(ks[1], (B, Nt, D), jnp.float32)
        lens = jnp.asarray(lengths)
        mask = jnp.arange(Nt)[None, :] < lens[:, None]        # (B, Nt) bool
        for (bi, ti) in holes:                                 # non-prefix holes
            mask = mask.at[bi, ti].set(False)

        out = fsod_adaptor(embeds, w1, b1, w2, b2, encoded_text, mask)
        out = jax.block_until_ready(out)
        assert out.shape == (B, Nq, MAX_TEXT_LEN)

        ref = reference_exact(embeds, w1, b1, w2, b2, encoded_text, mask)
        refb = reference_bf16(embeds, w1, b1, w2, b2, encoded_text, mask)
        out_np, ref_np, refb_np = map(np.asarray, (out, ref, refb))
        finite = np.isfinite(ref_np)
        # 1) -inf / masking pattern must match the PyTorch semantics exactly.
        assert np.array_equal(np.isfinite(out_np), finite)
        # 2) Tight check vs. a bf16-operand / f32-accumulate reference.
        assert np.allclose(out_np[finite], refb_np[finite], rtol=1e-2, atol=1e-2)
        # 3) bf16-level accuracy vs. the exact f32 erf-GELU PyTorch math.
        scale = float(np.std(ref_np[finite])) + 1.0
        assert float(np.max(np.abs(out_np[finite] - ref_np[finite]))) < 5e-2 * scale

    # Case 1: tiny batch -> auto BB=1, grid=2 (keeps both v7x TCs busy).
    run_case(1, B=2, Nq=16, Nt=8, lengths=[8, 5], holes=[(0, 3)])
    # Case 2: exercises auto batch_block>1 (BB=2, grid=2) and Nq padding 8->16.
    run_case(2, B=4, Nq=8, Nt=8, lengths=[8, 6, 4, 8], holes=[(2, 1)])

    print("KERNEL_OK")
</pallas_src>

<mosaic_0001>
module attributes {stable_mosaic.version = 11 : i64} {
  func.func @fsod_adaptor_kernel(%arg0: i32, %arg1: memref<1x16x256xf32, #tpu.memory_space<vmem>>, %arg2: memref<256x256xbf16, #tpu.memory_space<vmem>>, %arg3: memref<1x256xf32, #tpu.memory_space<vmem>>, %arg4: memref<256x256xbf16, #tpu.memory_space<vmem>>, %arg5: memref<1x256xf32, #tpu.memory_space<vmem>>, %arg6: memref<1x128x256xbf16, #tpu.memory_space<vmem>>, %arg7: memref<1x1x128xf32, #tpu.memory_space<vmem>>, %arg8: memref<1x16x256xf32, #tpu.memory_space<vmem>>) attributes {dimension_semantics = [#tpu.dimension_semantics<parallel>], iteration_bounds = array<i64: 2>, scalar_prefetch = 0 : i64, scratch_operands = 0 : i64, tpu.core_type = #tpu.core_type<tc>, window_params = [{transform_indices = @transform_0, window_bounds = array<i64: 1, 16, 256>}, {pipeline_mode = #tpu.pipeline_mode<synchronous>, transform_indices = @transform_1, window_bounds = array<i64: 256, 256>}, {pipeline_mode = #tpu.pipeline_mode<synchronous>, transform_indices = @transform_2, window_bounds = array<i64: 1, 256>}, {pipeline_mode = #tpu.pipeline_mode<synchronous>, transform_indices = @transform_3, window_bounds = array<i64: 256, 256>}, {pipeline_mode = #tpu.pipeline_mode<synchronous>, transform_indices = @transform_4, window_bounds = array<i64: 1, 256>}, {transform_indices = @transform_5, window_bounds = array<i64: 1, 128, 256>}, {transform_indices = @transform_6, window_bounds = array<i64: 1, 1, 128>}, {transform_indices = @transform_7, window_bounds = array<i64: 1, 16, 256>}]} {
    %c0 = arith.constant 0 : index
    %c0_0 = arith.constant 0 : index
    %c0_1 = arith.constant 0 : index
    %0 = vector.load %arg1[%c0, %c0_0, %c0_1] : memref<1x16x256xf32, #tpu.memory_space<vmem>>, vector<1x16x256xf32>
    %1 = vector.shape_cast %0 : vector<1x16x256xf32> to vector<16x256xf32>
    %2 = arith.truncf %1 : vector<16x256xf32> to vector<16x256xbf16>
    %c0_2 = arith.constant 0 : index
    %c0_3 = arith.constant 0 : index
    %3 = vector.load %arg2[%c0_2, %c0_3] : memref<256x256xbf16, #tpu.memory_space<vmem>>, vector<256x256xbf16>
    %cst = arith.constant dense<0.000000e+00> : vector<16x256xf32>
    %4 = tpu.matmul %2, %3, %cst {dimension_numbers = #tpu.dot_dimension_numbers<[1], [0], [0], [1], [0, 0, 1, 1], [], []>} : vector<16x256xbf16>, vector<256x256xbf16>, vector<16x256xf32> -> vector<16x256xf32>
    %c0_4 = arith.constant 0 : index
    %c0_5 = arith.constant 0 : index
    %5 = vector.load %arg3[%c0_4, %c0_5] : memref<1x256xf32, #tpu.memory_space<vmem>>, vector<1x256xf32>
    %6 = vector.broadcast %5 : vector<1x256xf32> to vector<16x256xf32>
    %7 = arith.addf %4, %6 : vector<16x256xf32>
    %cst_6 = arith.constant 5.000000e-01 : f32
    %8 = vector.broadcast %cst_6 : f32 to vector<16x256xf32>
    %9 = arith.mulf %8, %7 : vector<16x256xf32>
    %cst_7 = arith.constant 4.471500e-02 : f32
    %10 = vector.broadcast %cst_7 : f32 to vector<16x256xf32>
    %11 = arith.mulf %10, %7 : vector<16x256xf32>
    %12 = arith.mulf %11, %7 : vector<16x256xf32>
    %13 = arith.mulf %12, %7 : vector<16x256xf32>
    %14 = arith.addf %7, %13 : vector<16x256xf32>
    %cst_8 = arith.constant 0.797884583 : f32
    %15 = vector.broadcast %cst_8 : f32 to vector<16x256xf32>
    %16 = arith.mulf %15, %14 : vector<16x256xf32>
    %17 = math.tanh %16 : vector<16x256xf32>
    %cst_9 = arith.constant 1.000000e+00 : f32
    %18 = vector.broadcast %cst_9 : f32 to vector<16x256xf32>
    %19 = arith.addf %18, %17 : vector<16x256xf32>
    %20 = arith.mulf %9, %19 : vector<16x256xf32>
    %21 = arith.truncf %20 : vector<16x256xf32> to vector<16x256xbf16>
    %c0_10 = arith.constant 0 : index
    %c0_11 = arith.constant 0 : index
    %22 = vector.load %arg4[%c0_10, %c0_11] : memref<256x256xbf16, #tpu.memory_space<vmem>>, vector<256x256xbf16>
    %cst_12 = arith.constant dense<0.000000e+00> : vector<16x256xf32>
    %23 = tpu.matmul %21, %22, %cst_12 {dimension_numbers = #tpu.dot_dimension_numbers<[1], [0], [0], [1], [0, 0, 1, 1], [], []>} : vector<16x256xbf16>, vector<256x256xbf16>, vector<16x256xf32> -> vector<16x256xf32>
    %c0_13 = arith.constant 0 : index
    %c0_14 = arith.constant 0 : index
    %24 = vector.load %arg5[%c0_13, %c0_14] : memref<1x256xf32, #tpu.memory_space<vmem>>, vector<1x256xf32>
    %25 = vector.broadcast %24 : vector<1x256xf32> to vector<16x256xf32>
    %26 = arith.addf %23, %25 : vector<16x256xf32>
    %27 = vector.shape_cast %26 : vector<16x256xf32> to vector<1x16x256xf32>
    %28 = arith.truncf %27 : vector<1x16x256xf32> to vector<1x16x256xbf16>
    %c0_15 = arith.constant 0 : index
    %c0_16 = arith.constant 0 : index
    %c0_17 = arith.constant 0 : index
    %29 = vector.load %arg6[%c0_15, %c0_16, %c0_17] : memref<1x128x256xbf16, #tpu.memory_space<vmem>>, vector<1x128x256xbf16>
    "tpu.trace_start"() <{level = 10 : i32, message = "bqd,btd->bqt"}> : () -> ()
    %cst_18 = arith.constant dense<0.000000e+00> : vector<1x16x128xf32>
    %30 = tpu.matmul %28, %29, %cst_18 {dimension_numbers = #tpu.dot_dimension_numbers<[2], [2], [1], [1], [0, 0, 0, 1, 1, 1], [0], [0]>} : vector<1x16x256xbf16>, vector<1x128x256xbf16>, vector<1x16x128xf32> -> vector<1x16x128xf32>
    "tpu.trace_stop"() : () -> ()
    %c0_19 = arith.constant 0 : index
    %c0_20 = arith.constant 0 : index
    %c0_21 = arith.constant 0 : index
    %31 = vector.load %arg7[%c0_19, %c0_20, %c0_21] : memref<1x1x128xf32, #tpu.memory_space<vmem>>, vector<1x1x128xf32>
    %cst_22 = arith.constant 5.000000e-01 : f32
    %32 = vector.broadcast %cst_22 : f32 to vector<1x1x128xf32>
    %33 = arith.cmpf ogt, %31, %32 : vector<1x1x128xf32>
    %cst_23 = arith.constant 0xFF800000 : f32
    %34 = vector.shape_cast %33 : vector<1x1x128xi1> to vector<1x1x128xi1>
    %35 = vector.broadcast %34 : vector<1x1x128xi1> to vector<1x16x128xi1>
    %36 = vector.broadcast %cst_23 : f32 to vector<1x16x128xf32>
    %37 = arith.select %35, %30, %36 : vector<1x16x128xi1>, vector<1x16x128xf32>
    %c0_24 = arith.constant 0 : index
    %c0_25 = arith.constant 0 : index
    %c0_26 = arith.constant 0 : index
    %38 = vector.load %arg8[%c0_24, %c0_25, %c0_26] : memref<1x16x256xf32, #tpu.memory_space<vmem>>, vector<1x16x128xf32>
    tpu.vector_store %arg8[%c0_24, %c0_25, %c0_26], %37 {strides = array<i32>} : memref<1x16x256xf32, #tpu.memory_space<vmem>>, vector<1x16x128xf32>,
    %cst_27 = arith.constant 0xFF800000 : f32
    %39 = vector.broadcast %cst_27 : f32 to vector<1x16x128xf32>
    %c0_28 = arith.constant 0 : index
    %c0_29 = arith.constant 0 : index
    %c128 = arith.constant 128 : index
    %40 = vector.load %arg8[%c0_28, %c0_29, %c128] : memref<1x16x256xf32, #tpu.memory_space<vmem>>, vector<1x16x128xf32>
    tpu.vector_store %arg8[%c0_28, %c0_29, %c128], %39 {strides = array<i32>} : memref<1x16x256xf32, #tpu.memory_space<vmem>>, vector<1x16x128xf32>,
    return
  }
  func.func @transform_0(%arg0: i32) -> (i32, i32, i32) {
    %c0_i32 = arith.constant 0 : i32
    %c0_i32_0 = arith.constant 0 : i32
    %c0_i32_1 = arith.constant 0 : i32
    return %arg0, %c0_i32, %c0_i32_0 : i32, i32, i32
  }
  func.func @transform_1(%arg0: i32) -> (i32, i32) {
    %c0_i32 = arith.constant 0 : i32
    %c0_i32_0 = arith.constant 0 : i32
    %c0_i32_1 = arith.constant 0 : i32
    return %c0_i32, %c0_i32_0 : i32, i32
  }
  func.func @transform_2(%arg0: i32) -> (i32, i32) {
    %c0_i32 = arith.constant 0 : i32
    %c0_i32_0 = arith.constant 0 : i32
    %c0_i32_1 = arith.constant 0 : i32
    return %c0_i32, %c0_i32_0 : i32, i32
  }
  func.func @transform_3(%arg0: i32) -> (i32, i32) {
    %c0_i32 = arith.constant 0 : i32
    %c0_i32_0 = arith.constant 0 : i32
    %c0_i32_1 = arith.constant 0 : i32
    return %c0_i32, %c0_i32_0 : i32, i32
  }
  func.func @transform_4(%arg0: i32) -> (i32, i32) {
    %c0_i32 = arith.constant 0 : i32
    %c0_i32_0 = arith.constant 0 : i32
    %c0_i32_1 = arith.constant 0 : i32
    return %c0_i32, %c0_i32_0 : i32, i32
  }
  func.func @transform_5(%arg0: i32) -> (i32, i32, i32) {
    %c0_i32 = arith.constant 0 : i32
    %c0_i32_0 = arith.constant 0 : i32
    %c0_i32_1 = arith.constant 0 : i32
    return %arg0, %c0_i32, %c0_i32_0 : i32, i32, i32
  }
  func.func @transform_6(%arg0: i32) -> (i32, i32, i32) {
    %c0_i32 = arith.constant 0 : i32
    %c0_i32_0 = arith.constant 0 : i32
    %c0_i32_1 = arith.constant 0 : i32
    return %arg0, %c0_i32, %c0_i32_0 : i32, i32, i32
  }
  func.func @transform_7(%arg0: i32) -> (i32, i32, i32) {
    %c0_i32 = arith.constant 0 : i32
    %c0_i32_0 = arith.constant 0 : i32
    %c0_i32_1 = arith.constant 0 : i32
    return %arg0, %c0_i32, %c0_i32_0 : i32, i32, i32
  }
}

</mosaic_0001>

<llo_original>
// kernel: tpu_custom_call.1
$region0: #{tpu_custom_call.1}
  #allocation0 [shape = 'u32[]', space=smem, size = 0x4, offset = 0x4, fixed_abs, tag = 'smem constant byte address 0x4 - core index']
  #allocation1 [shape = 'u32[144,128]{1,0:T(1,128)}', space=vmem, size = 0x12000, scoped, tag = 'internal scratch']
  %s0 = inlined_call_operand.hbm [shape: f32[2,16,256], index: 0, kind: input, shape index: {}]
  %s1 = inlined_call_operand.hbm [shape: bf16[256,256], index: 1, kind: input, shape index: {}]
  %s2 = inlined_call_operand.vmem [shape: f32[1,256], index: 2, kind: input, shape index: {}]
  %s3 = inlined_call_operand.hbm [shape: bf16[256,256], index: 3, kind: input, shape index: {}]
  %s4 = inlined_call_operand.vmem [shape: f32[1,256], index: 4, kind: input, shape index: {}]
  %s5 = inlined_call_operand.hbm [shape: bf16[2,128,256], index: 5, kind: input, shape index: {}]
  %s6 = inlined_call_operand.vmem [shape: f32[2,1,128], index: 6, kind: input, shape index: {}]
  %s7 = inlined_call_operand.hbm [shape: f32[2,16,256], index: 7, kind: output, shape index: {}]
  %s8 = sld [smem:[#allocation0]]
  $region77: #{tpu_custom_call.1} parent=0
    _
  %s10 = ssub.s32 1, %s8
  %s11 = scalar_select 0, %s10, %s8
  $region1: #{tpu_custom_call.1} parent=0
    #allocation2 [shape = 'u8[32768]{0}', space=vmem, size = 0x8000, scoped, tag = 'input window, operand 0']
    #allocation3 [shape = 's32[2]{0}', space=sflag, size = 0x8, scoped, tag = 'scoped memory for tpu_custom_call.1']
    #allocation4 [shape = 's32[2]{0}', space=sflag, size = 0x8, scoped, tag = 'scoped memory for tpu_custom_call.1']
    #allocation5 [shape = 'u8[131072]{0}', space=vmem, size = 0x20000, scoped, tag = 'input window, operand 1, single buffered']
    #allocation6 [shape = 's32[1]{0}', space=sflag, size = 0x4, scoped, tag = 'scoped memory for tpu_custom_call.1']
    #allocation7 [shape = 'u8[131072]{0}', space=vmem, size = 0x20000, scoped, tag = 'input window, operand 3, single buffered']
    #allocation8 [shape = 'u8[131072]{0}', space=vmem, size = 0x20000, scoped, tag = 'input window, operand 5']
    #allocation9 [shape = 's32[2]{0}', space=sflag, size = 0x8, scoped, tag = 'scoped memory for tpu_custom_call.1']
    #allocation10 [shape = 'u8[32768]{0}', space=vmem, size = 0x8000, scoped, tag = 'output window, operand 0']
    %12 = vsyncpa [#allocation3], 0
    %s13 = scalar_lea.sflag [#allocation3], 1
    %14 = vsyncpa %s13, 0
    %15 = vsyncpa [#allocation6], 0
    %16 = vsyncpa [#allocation9], 0
    %s17 = scalar_lea.sflag [#allocation9], 1
    %18 = vsyncpa %s17, 0
    %19 = vsyncpa [#allocation4], 0
    %s20 = scalar_lea.sflag [#allocation4], 1
    %21 = vsyncpa %s20, 0
    loop: start=0, step=1, limit=4
    $region2: #{tpu_custom_call.1} parent=1 // loop_pre_header
      _
    $region3: #{tpu_custom_call.1} parent=1 // loop_header
      %s23 = sphi 0, %s27
      %p24 = scmp.ge.s32.totalorder %s23, 4
      %s33 = sphi 0, %s35
      %s36 = sphi 0, %s33
      %s37 = sphi 0, %s36
      %s53 = sphi 0, %s37
      %s57 = sphi 0, %s57
      %s59 = sphi 0, %s57
      %s60 = sphi 0, %s59
      %s74 = sphi 0, %s60
      %s78 = sphi 0, %s78
      %s80 = sphi 0, %s78
      %s81 = sphi 0, %s80
      %s95 = sphi 0, %s81
      %s99 = sphi 0, %s99
      %s101 = sphi 0, %s99
      %s102 = sphi 0, %s101
      %s116 = sphi 0, %s102
      %s120 = sphi 0, %s120
      %s122 = sphi 0, %s120
      %s123 = sphi 0, %s122
      %s137 = sphi 0, %s123
      %s143 = sphi 0, %s145
      %s146 = sphi 0, %s143
      %s147 = sphi 0, %s146
      %s163 = sphi 0, %s147
      %s169 = sphi 0, %s171
      %s172 = sphi 0, %s169
      %s173 = sphi 0, %s172
      %s189 = sphi 0, %s173
      %s195 = sphi 0, %s197
      %s198 = sphi 0, %s195
      %s199 = sphi 0, %s198
      %s215 = sphi 0, %s199
    $region4: #{tpu_custom_call.1} parent=1 // loop_header_branch
      %26 = sbr.rel (%p24) target = $region8
    $region5: #{tpu_custom_call.1} parent=1 // loop_body
      %s28 = ssub.s32 %s23, 1
      %s29 = ssub.s32 %s23, 2
      %s30 = sadd.s32 %s23, 1
      %s31 = ssub.s32 %s23, %s30
      %p32 = scmp.eq.s32.totalorder %s31, 0
      %s34 = sadd.s32 %s33, 1
      %s35 = scalar_select %p32, %s33, %s34
      %p38 = pneg %p32
      %p39 = scmp.eq.s32.totalorder %s23, 1
      %p40 = por %p38, %p39
      %p41 = scmp.ne.s32.totalorder %s33, %s36
      %p42 = scmp.eq.s32.totalorder %s23, 0
      %p43 = por %p41, %p42
      %p44 = scmp.ne.s32.totalorder %s33, %s36
      %p45 = scmp.eq.s32.totalorder %s28, 1
      %p46 = por %p44, %p45
      %p47 = scmp.ne.s32.totalorder %s36, %s37
      %p48 = scmp.eq.s32.totalorder %s28, 0
      %p49 = por %p47, %p48
      %p50 = scmp.ne.s32.totalorder %s36, %s37
      %p51 = scmp.eq.s32.totalorder %s29, 1
      %p52 = por %p50, %p51
      %p54 = scmp.ne.s32.totalorder %s37, %s53
      %p55 = scmp.eq.s32.totalorder %s29, 0
      %p56 = por %p54, %p55
      %s58 = sadd.s32 %s57, 1
      %p61 = scmp.eq.s32.totalorder %s23, 1
      %p62 = scmp.ne.s32.totalorder %s57, %s59
      %p63 = scmp.eq.s32.totalorder %s23, 0
      %p64 = por %p62, %p63
      %p65 = scmp.ne.s32.totalorder %s57, %s59
      %p66 = scmp.eq.s32.totalorder %s28, 1
      %p67 = por %p65, %p66
      %p68 = scmp.ne.s32.totalorder %s59, %s60
      %p69 = scmp.eq.s32.totalorder %s28, 0
      %p70 = por %p68, %p69
      %p71 = scmp.ne.s32.totalorder %s59, %s60
      %p72 = scmp.eq.s32.totalorder %s29, 1
      %p73 = por %p71, %p72
      %p75 = scmp.ne.s32.totalorder %s60, %s74
      %p76 = scmp.eq.s32.totalorder %s29, 0
      %p77 = por %p75, %p76
      %s79 = sadd.s32 %s78, 1
      %p82 = scmp.eq.s32.totalorder %s23, 1
      %p83 = scmp.ne.s32.totalorder %s78, %s80
      %p84 = scmp.eq.s32.totalorder %s23, 0
      %p85 = por %p83, %p84
      %p86 = scmp.ne.s32.totalorder %s78, %s80
      %p87 = scmp.eq.s32.totalorder %s28, 1
      %p88 = por %p86, %p87
      %p89 = scmp.ne.s32.totalorder %s80, %s81
      %p90 = scmp.eq.s32.totalorder %s28, 0
      %p91 = por %p89, %p90
      %p92 = scmp.ne.s32.totalorder %s80, %s81
      %p93 = scmp.eq.s32.totalorder %s29, 1
      %p94 = por %p92, %p93
      %p96 = scmp.ne.s32.totalorder %s81, %s95
      %p97 = scmp.eq.s32.totalorder %s29, 0
      %p98 = por %p96, %p97
      %s100 = sadd.s32 %s99, 1
      %p103 = scmp.eq.s32.totalorder %s23, 1
      %p104 = scmp.ne.s32.totalorder %s99, %s101
      %p105 = scmp.eq.s32.totalorder %s23, 0
      %p106 = por %p104, %p105
      %p107 = scmp.ne.s32.totalorder %s99, %s101
      %p108 = scmp.eq.s32.totalorder %s28, 1
      %p109 = por %p107, %p108
      %p110 = scmp.ne.s32.totalorder %s101, %s102
      %p111 = scmp.eq.s32.totalorder %s28, 0
      %p112 = por %p110, %p111
      %p113 = scmp.ne.s32.totalorder %s101, %s102
      %p114 = scmp.eq.s32.totalorder %s29, 1
      %p115 = por %p113, %p114
      %p117 = scmp.ne.s32.totalorder %s102, %s116
      %p118 = scmp.eq.s32.totalorder %s29, 0
      %p119 = por %p117, %p118
      %s121 = sadd.s32 %s120, 1
      %p124 = scmp.eq.s32.totalorder %s23, 1
      %p125 = scmp.ne.s32.totalorder %s120, %s122
      %p126 = scmp.eq.s32.totalorder %s23, 0
      %p127 = por %p125, %p126
      %p128 = scmp.ne.s32.totalorder %s120, %s122
      %p129 = scmp.eq.s32.totalorder %s28, 1
      %p130 = por %p128, %p129
      %p131 = scmp.ne.s32.totalorder %s122, %s123
      %p132 = scmp.eq.s32.totalorder %s28, 0
      %p133 = por %p131, %p132
      %p134 = scmp.ne.s32.totalorder %s122, %s123
      %p135 = scmp.eq.s32.totalorder %s29, 1
      %p136 = por %p134, %p135
      %p138 = scmp.ne.s32.totalorder %s123, %s137
      %p139 = scmp.eq.s32.totalorder %s29, 0
      %p140 = por %p138, %p139
      %s141 = ssub.s32 %s23, %s30
      %p142 = scmp.eq.s32.totalorder %s141, 0
      %s144 = sadd.s32 %s143, 1
      %s145 = scalar_select %p142, %s143, %s144
      %p148 = pneg %p142
      %p149 = scmp.eq.s32.totalorder %s23, 1
      %p150 = por %p148, %p149
      %p151 = scmp.ne.s32.totalorder %s143, %s146
      %p152 = scmp.eq.s32.totalorder %s23, 0
      %p153 = por %p151, %p152
      %p154 = scmp.ne.s32.totalorder %s143, %s146
      %p155 = scmp.eq.s32.totalorder %s28, 1
      %p156 = por %p154, %p155
      %p157 = scmp.ne.s32.totalorder %s146, %s147
      %p158 = scmp.eq.s32.totalorder %s28, 0
      %p159 = por %p157, %p158
      %p160 = scmp.ne.s32.totalorder %s146, %s147
      %p161 = scmp.eq.s32.totalorder %s29, 1
      %p162 = por %p160, %p161
      %p164 = scmp.ne.s32.totalorder %s147, %s163
      %p165 = scmp.eq.s32.totalorder %s29, 0
      %p166 = por %p164, %p165
      %s167 = ssub.s32 %s23, %s30
      %p168 = scmp.eq.s32.totalorder %s167, 0
      %s170 = sadd.s32 %s169, 1
      %s171 = scalar_select %p168, %s169, %s170
      %p174 = pneg %p168
      %p175 = scmp.eq.s32.totalorder %s23, 1
      %p176 = por %p174, %p175
      %p177 = scmp.ne.s32.totalorder %s169, %s172
      %p178 = scmp.eq.s32.totalorder %s23, 0
      %p179 = por %p177, %p178
      %p180 = scmp.ne.s32.totalorder %s169, %s172
      %p181 = scmp.eq.s32.totalorder %s28, 1
      %p182 = por %p180, %p181
      %p183 = scmp.ne.s32.totalorder %s172, %s173
      %p184 = scmp.eq.s32.totalorder %s28, 0
      %p185 = por %p183, %p184
      %p186 = scmp.ne.s32.totalorder %s172, %s173
      %p187 = scmp.eq.s32.totalorder %s29, 1
      %p188 = por %p186, %p187
      %p190 = scmp.ne.s32.totalorder %s173, %s189
      %p191 = scmp.eq.s32.totalorder %s29, 0
      %p192 = por %p190, %p191
      %s193 = ssub.s32 %s23, %s30
      %p194 = scmp.eq.s32.totalorder %s193, 0
      %s196 = sadd.s32 %s195, 1
      %s197 = scalar_select %p194, %s195, %s196
      %p200 = pneg %p194
      %p201 = scmp.eq.s32.totalorder %s23, 1
      %p202 = por %p200, %p201
      %p203 = scmp.ne.s32.totalorder %s195, %s198
      %p204 = scmp.eq.s32.totalorder %s23, 0
      %p205 = por %p203, %p204
      %p206 = scmp.ne.s32.totalorder %s195, %s198
      %p207 = scmp.eq.s32.totalorder %s28, 1
      %p208 = por %p206, %p207
      %p209 = scmp.ne.s32.totalorder %s198, %s199
      %p210 = scmp.eq.s32.totalorder %s28, 0
      %p211 = por %p209, %p210
      %p212 = scmp.ne.s32.totalorder %s198, %s199
      %p213 = scmp.eq.s32.totalorder %s29, 1
      %p214 = por %p212, %p213
      %p216 = scmp.ne.s32.totalorder %s199, %s215
      %p217 = scmp.eq.s32.totalorder %s29, 0
      %p218 = por %p216, %p217
      %p219 = scmp.le.s32.totalorder 1, %s23
      %p220 = scmp.lt.s32.totalorder %s23, 3
      %p221 = pnand %p219, %p220
      %p222 = pneg %p221
      // Predicated region
      $region9: #{tpu_custom_call.1} parent=5 // pred_check
        _
      $region10: #{tpu_custom_call.1} parent=5 // pred_check_branch
        %224 = sbr.rel (%p221) target = $region12
      $region11: #{tpu_custom_call.1} parent=5 // pred_region
        %s225 = ssub.s32 %s23, 1
        // Predicated region
        $region13: #{tpu_custom_call.1} parent=11 // pred_check
          %p226 = pneg %p70
        $region14: #{tpu_custom_call.1} parent=11 // pred_check_branch
          %228 = sbr.rel (%p226) target = $region16
        $region15: #{tpu_custom_call.1} parent=11 // pred_region
          %s230 = ssub.s32 4096, 4096
          %231 = vsyncadd [#allocation6], %s230
          %s232 = sshll.u32 [#allocation5], 4
          %s233 = int_to_ptr.vmem [resolvable:$true] %s232
          %238 = dma.hbm_to_vmem [thread:$0]  %s1, 4096, %s233, [#allocation6], 128, 128, 8
        $region16: #{tpu_custom_call.1} parent=11 // pred_fallthru
          _
        // Predicated region
        $region17: #{tpu_custom_call.1} parent=11 // pred_check
          %p239 = pneg %p91
        $region18: #{tpu_custom_call.1} parent=11 // pred_check_branch
          %241 = sbr.rel (%p239) target = $region20
        $region19: #{tpu_custom_call.1} parent=11 // pred_region
          _
        $region20: #{tpu_custom_call.1} parent=11 // pred_fallthru
          _
        // Predicated region
        $region21: #{tpu_custom_call.1} parent=11 // pred_check
          %p242 = pneg %p112
        $region22: #{tpu_custom_call.1} parent=11 // pred_check_branch
          %244 = sbr.rel (%p242) target = $region24
        $region23: #{tpu_custom_call.1} parent=11 // pred_region
          %s246 = ssub.s32 4096, 4096
          %247 = vsyncadd [#allocation6], %s246
          %s248 = sshll.u32 [#allocation7], 4
          %s249 = int_to_ptr.vmem [resolvable:$true] %s248
          %254 = dma.hbm_to_vmem [thread:$0]  %s3, 4096, %s249, [#allocation6], 128, 128, 8
        $region24: #{tpu_custom_call.1} parent=11 // pred_fallthru
          _
        // Predicated region
        $region25: #{tpu_custom_call.1} parent=11 // pred_check
          %p255 = pneg %p133
        $region26: #{tpu_custom_call.1} parent=11 // pred_check_branch
          %257 = sbr.rel (%p255) target = $region28
        $region27: #{tpu_custom_call.1} parent=11 // pred_region
          _
        $region28: #{tpu_custom_call.1} parent=11 // pred_fallthru
          _
      $region12: #{tpu_custom_call.1} parent=5 // pred_fallthru
        _
      %p258 = scmp.lt.s32.totalorder %s23, 2
      // Predicated region
      $region29: #{tpu_custom_call.1} parent=5 // pred_check
        %p259 = pneg %p258
      $region30: #{tpu_custom_call.1} parent=5 // pred_check_branch
        %261 = sbr.rel (%p259) target = $region32
      $region31: #{tpu_custom_call.1} parent=5 // pred_region
        // Predicated region
        $region33: #{tpu_custom_call.1} parent=31 // pred_check
          %p262 = pneg %p43
        $region34: #{tpu_custom_call.1} parent=31 // pred_check_branch
          %264 = sbr.rel (%p262) target = $region36
        $region35: #{tpu_custom_call.1} parent=31 // pred_region
          %s265 = sand.u32 %s33, 1
          %s266 = scalar_lea.sflag [#allocation3], %s265
          %s267 = sand.u32 %s33, 1
          %s268 = smul.addr %s267, 32
          %s269 = scalar_lea.vmem [#allocation2], %s268
          %s271 = ssub.s32 512, 512
          %272 = vsyncadd %s266, %s271
          %s273 = smul.addr %s23, 4
          %s274 = smul.addr %s273, 128
          %s275 = scalar_lea.hbm %s0, %s274
          %s276 = sshll.u32 %s269, 4
          %s277 = int_to_ptr.vmem [resolvable:$true] %s276
          %282 = dma.hbm_to_vmem [thread:$0]  %s275, 512, %s277, %s266, 256, 256, 16
        $region36: #{tpu_custom_call.1} parent=31 // pred_fallthru
          _
        // Predicated region
        $region37: #{tpu_custom_call.1} parent=31 // pred_check
          %p283 = pneg %p153
        $region38: #{tpu_custom_call.1} parent=31 // pred_check_branch
          %285 = sbr.rel (%p283) target = $region40
        $region39: #{tpu_custom_call.1} parent=31 // pred_region
          %s286 = sand.u32 %s143, 1
          %s287 = scalar_lea.sflag [#allocation9], %s286
          %s288 = sand.u32 %s143, 1
          %s289 = smul.addr %s288, 128
          %s290 = scalar_lea.vmem [#allocation8], %s289
          %s292 = ssub.s32 2048, 2048
          %293 = vsyncadd %s287, %s292
          %s294 = smul.addr %s23, 32
          %s295 = smul.addr %s294, 64
          %s296 = scalar_lea.hbm %s5, %s295
          %s297 = sshll.u32 %s290, 4
          %s298 = int_to_ptr.vmem [resolvable:$true] %s297
          %303 = dma.hbm_to_vmem [thread:$0]  %s296, 2048, %s298, %s287, 128, 128, 8
        $region40: #{tpu_custom_call.1} parent=31 // pred_fallthru
          _
        // Predicated region
        $region41: #{tpu_custom_call.1} parent=31 // pred_check
          %p304 = pneg %p179
        $region42: #{tpu_custom_call.1} parent=31 // pred_check_branch
          %306 = sbr.rel (%p304) target = $region44
        $region43: #{tpu_custom_call.1} parent=31 // pred_region
          %p307 = scmp.lt.s32.totalorder %s23, 1
          %s308 = scalar_select %p307, %s23, 1
          %s309 = scalar_lea.vmem %s6, %s308
        $region44: #{tpu_custom_call.1} parent=31 // pred_fallthru
          _
      $region32: #{tpu_custom_call.1} parent=5 // pred_fallthru
        _
      %p310 = scmp.le.s32.totalorder 1, %s23
      %p311 = scmp.lt.s32.totalorder %s23, 3
      %p312 = pnand %p310, %p311
      %p313 = pneg %p312
      // Predicated region
      $region45: #{tpu_custom_call.1} parent=5 // pred_check
        _
      $region46: #{tpu_custom_call.1} parent=5 // pred_check_branch
        %315 = sbr.rel (%p312) target = $region48
      $region47: #{tpu_custom_call.1} parent=5 // pred_region
        %s316 = ssub.s32 %s23, 1
        %s317 = sand.u32 %s36, 1
        %s318 = scalar_lea.sflag [#allocation3], %s317
        %s319 = sand.u32 %s36, 1
        %s320 = smul.addr %s319, 32
        %s321 = scalar_lea.vmem [#allocation2], %s320
        // Predicated region
        $region49: #{tpu_custom_call.1} parent=47 // pred_check
          %p322 = pneg %p49
        $region50: #{tpu_custom_call.1} parent=47 // pred_check_branch
          %324 = sbr.rel (%p322) target = $region52
        $region51: #{tpu_custom_call.1} parent=47 // pred_region
          %325 = dma.done %s318, 512
        $region52: #{tpu_custom_call.1} parent=47 // pred_fallthru
          _
        // Predicated region
        $region53: #{tpu_custom_call.1} parent=47 // pred_check
          %p326 = pneg %p70
        $region54: #{tpu_custom_call.1} parent=47 // pred_check_branch
          %328 = sbr.rel (%p326) target = $region56
        $region55: #{tpu_custom_call.1} parent=47 // pred_region
          %329 = dma.done [#allocation6], 4096
        $region56: #{tpu_custom_call.1} parent=47 // pred_fallthru
          _
        // Predicated region
        $region57: #{tpu_custom_call.1} parent=47 // pred_check
          %p330 = pneg %p112
        $region58: #{tpu_custom_call.1} parent=47 // pred_check_branch
          %332 = sbr.rel (%p330) target = $region60
        $region59: #{tpu_custom_call.1} parent=47 // pred_region
          %333 = dma.done [#allocation6], 4096
        $region60: #{tpu_custom_call.1} parent=47 // pred_fallthru
          _
        %s334 = sand.u32 %s146, 1
        %s335 = scalar_lea.sflag [#allocation9], %s334
        %s336 = sand.u32 %s146, 1
        %s337 = smul.addr %s336, 128
        %s338 = scalar_lea.vmem [#allocation8], %s337
        // Predicated region
        $region61: #{tpu_custom_call.1} parent=47 // pred_check
          %p339 = pneg %p159
        $region62: #{tpu_custom_call.1} parent=47 // pred_check_branch
          %341 = sbr.rel (%p339) target = $region64
        $region63: #{tpu_custom_call.1} parent=47 // pred_region
          %342 = dma.done %s335, 2048
        $region64: #{tpu_custom_call.1} parent=47 // pred_fallthru
          _
        %s343 = sand.u32 %s36, 1
        %s344 = scalar_lea.sflag [#allocation3], %s343
        %s345 = sand.u32 %s36, 1
        %s346 = smul.addr %s345, 32
        %s347 = scalar_lea.vmem [#allocation2], %s346
        %p348 = pneg %p49
        %p349 = pneg %p46
        %p350 = pneg %p70
        %p351 = pneg %p67
        %p352 = pneg %p91
        %p353 = pneg %p88
        %p354 = pneg %p112
        %p355 = pneg %p109
        %p356 = pneg %p133
        %p357 = pneg %p130
        %s358 = sand.u32 %s146, 1
        %s359 = scalar_lea.sflag [#allocation9], %s358
        %s360 = sand.u32 %s146, 1
        %s361 = smul.addr %s360, 128
        %s362 = scalar_lea.vmem [#allocation8], %s361
        %p363 = pneg %p159
        %p364 = pneg %p156
        %p365 = scmp.lt.s32.totalorder %s28, 1
        %s366 = scalar_select %p365, %s28, 1
        %s367 = scalar_lea.vmem %s6, %s366
        %p368 = pneg %p185
        %p369 = pneg %p182
        %p370 = pneg %p211
        %p371 = pneg %p208
        %s372 = sand.u32 %s198, 1
        %s373 = scalar_lea.sflag [#allocation4], %s372
        %s374 = sand.u32 %s198, 1
        %s375 = smul.addr %s374, 32
        %s376 = scalar_lea.vmem [#allocation10], %s375
        %p377 = scmp.lt.s32.totalorder %s28, 1
        %s378 = scalar_select %p377, %s28, 1
        %s379 = scalar_lea.vmem %s6, %s378
        %v381 = vld [vmem:[%s321] sm:$0xff]
        %v382 = vld [vmem:[%s321 + $0x8] sm:$0xff]
        %v383 = vld [vmem:[%s321 + $0x10] sm:$0xff]
        %v384 = vld [vmem:[%s321 + $0x18] sm:$0xff]
        %v385 = vpack.c.bf16 %v383, %v381
        %v386 = vpack.c.bf16 %v384, %v382
        %v387 = vld [vmem:[#allocation5] sm:$0xff]
        %v388 = vld [vmem:[#allocation5 + $0x8] sm:$0xff]
        %v389 = vld [vmem:[#allocation5 + $0x10] sm:$0xff]
        %v390 = vld [vmem:[#allocation5 + $0x18] sm:$0xff]
        %v391 = vld [vmem:[#allocation5 + $0x20] sm:$0xff]
        %v392 = vld [vmem:[#allocation5 + $0x28] sm:$0xff]
        %v393 = vld [vmem:[#allocation5 + $0x30] sm:$0xff]
        %v394 = vld [vmem:[#allocation5 + $0x38] sm:$0xff]
        %v395 = vld [vmem:[#allocation5 + $0x40] sm:$0xff]
        %v396 = vld [vmem:[#allocation5 + $0x48] sm:$0xff]
        %v397 = vld [vmem:[#allocation5 + $0x50] sm:$0xff]
        %v398 = vld [vmem:[#allocation5 + $0x58] sm:$0xff]
        %v399 = vld [vmem:[#allocation5 + $0x60] sm:$0xff]
        %v400 = vld [vmem:[#allocation5 + $0x68] sm:$0xff]
        %v401 = vld [vmem:[#allocation5 + $0x70] sm:$0xff]
        %v402 = vld [vmem:[#allocation5 + $0x78] sm:$0xff]
        %v403 = vld [vmem:[#allocation5 + $0x80] sm:$0xff]
        %v404 = vld [vmem:[#allocation5 + $0x88] sm:$0xff]
        %v405 = vld [vmem:[#allocation5 + $0x90] sm:$0xff]
        %v406 = vld [vmem:[#allocation5 + $0x98] sm:$0xff]
        %v407 = vld [vmem:[#allocation5 + $0xa0] sm:$0xff]
        %v408 = vld [vmem:[#allocation5 + $0xa8] sm:$0xff]
        %v409 = vld [vmem:[#allocation5 + $0xb0] sm:$0xff]
        %v410 = vld [vmem:[#allocation5 + $0xb8] sm:$0xff]
        %v411 = vld [vmem:[#allocation5 + $0xc0] sm:$0xff]
        %v412 = vld [vmem:[#allocation5 + $0xc8] sm:$0xff]
        %v413 = vld [vmem:[#allocation5 + $0xd0] sm:$0xff]
        %v414 = vld [vmem:[#allocation5 + $0xd8] sm:$0xff]
        %v415 = vld [vmem:[#allocation5 + $0xe0] sm:$0xff]
        %v416 = vld [vmem:[#allocation5 + $0xe8] sm:$0xff]
        %v417 = vld [vmem:[#allocation5 + $0xf0] sm:$0xff]
        %v418 = vld [vmem:[#allocation5 + $0xf8] sm:$0xff]
        %v419 = vld [vmem:[%s2] sm:$0x3]
        %v421 = vlaneseq
        %v422 = vshrl.u32 %v421, 7
        %v423 = vsub.s32 0, %v422
        %v424 = vrot.slane %v419, %v423
        %v425 = vlaneseq
        %v426 = vshrl.u32 %v425, 7
        %v427 = vsub.s32 1, %v426
        %v428 = vrot.slane %v419, %v427
        %v463 = vunpack.c.l.b16 %v387
        %v464 = vunpack.c.h.b16 %v387
        %v465 = vunpack.c.l.b16 %v388
        %v466 = vunpack.c.h.b16 %v388
        %v467 = vunpack.c.l.b16 %v389
        %v468 = vunpack.c.h.b16 %v389
        %v469 = vunpack.c.l.b16 %v390
        %v470 = vunpack.c.h.b16 %v390
        %v471 = vunpack.c.l.b16 %v391
        %v472 = vunpack.c.h.b16 %v391
        %v473 = vunpack.c.l.b16 %v392
        %v474 = vunpack.c.h.b16 %v392
        %v475 = vunpack.c.l.b16 %v393
        %v476 = vunpack.c.h.b16 %v393
        %v477 = vunpack.c.l.b16 %v394
        %v478 = vunpack.c.h.b16 %v394
        %v479 = vunpack.c.l.b16 %v395
        %v480 = vunpack.c.h.b16 %v395
        %v481 = vunpack.c.l.b16 %v396
        %v482 = vunpack.c.h.b16 %v396
        %v483 = vunpack.c.l.b16 %v397
        %v484 = vunpack.c.h.b16 %v397
        %v485 = vunpack.c.l.b16 %v398
        %v486 = vunpack.c.h.b16 %v398
        %v487 = vunpack.c.l.b16 %v399
        %v488 = vunpack.c.h.b16 %v399
        %v489 = vunpack.c.l.b16 %v400
        %v490 = vunpack.c.h.b16 %v400
        %v491 = vunpack.c.l.b16 %v401
        %v492 = vunpack.c.h.b16 %v401
        %v493 = vunpack.c.l.b16 %v402
        %v494 = vunpack.c.h.b16 %v402
        %v495 = vunpack.c.l.b16 %v403
        %v496 = vunpack.c.h.b16 %v403
        %v497 = vunpack.c.l.b16 %v404
        %v498 = vunpack.c.h.b16 %v404
        %v499 = vunpack.c.l.b16 %v405
        %v500 = vunpack.c.h.b16 %v405
        %v501 = vunpack.c.l.b16 %v406
        %v502 = vunpack.c.h.b16 %v406
        %v503 = vunpack.c.l.b16 %v407
        %v504 = vunpack.c.h.b16 %v407
        %v505 = vunpack.c.l.b16 %v408
        %v506 = vunpack.c.h.b16 %v408
        %v507 = vunpack.c.l.b16 %v409
        %v508 = vunpack.c.h.b16 %v409
        %v509 = vunpack.c.l.b16 %v410
        %v510 = vunpack.c.h.b16 %v410
        %v511 = vunpack.c.l.b16 %v411
        %v512 = vunpack.c.h.b16 %v411
        %v513 = vunpack.c.l.b16 %v412
        %v514 = vunpack.c.h.b16 %v412
        %v515 = vunpack.c.l.b16 %v413
        %v516 = vunpack.c.h.b16 %v413
        %v517 = vunpack.c.l.b16 %v414
        %v518 = vunpack.c.h.b16 %v414
        %v519 = vunpack.c.l.b16 %v415
        %v520 = vunpack.c.h.b16 %v415
        %v521 = vunpack.c.l.b16 %v416
        %v522 = vunpack.c.h.b16 %v416
        %v523 = vunpack.c.l.b16 %v417
        %v524 = vunpack.c.h.b16 %v417
        %v525 = vunpack.c.l.b16 %v418
        %v526 = vunpack.c.h.b16 %v418
        %v527 = vpack.c.b16 %v465, %v463
        %v528 = vpack.c.b16 %v466, %v464
        %v529 = vpack.c.b16 %v469, %v467
        %v530 = vpack.c.b16 %v470, %v468
        %v531 = vpack.c.b16 %v473, %v471
        %v532 = vpack.c.b16 %v474, %v472
        %v533 = vpack.c.b16 %v477, %v475
        %v534 = vpack.c.b16 %v478, %v476
        %v535 = vpack.c.b16 %v481, %v479
        %v536 = vpack.c.b16 %v482, %v480
        %v537 = vpack.c.b16 %v485, %v483
        %v538 = vpack.c.b16 %v486, %v484
        %v539 = vpack.c.b16 %v489, %v487
        %v540 = vpack.c.b16 %v490, %v488
        %v541 = vpack.c.b16 %v493, %v491
        %v542 = vpack.c.b16 %v494, %v492
        %v543 = vpack.c.b16 %v497, %v495
        %v544 = vpack.c.b16 %v498, %v496
        %v545 = vpack.c.b16 %v501, %v499
        %v546 = vpack.c.b16 %v502, %v500
        %v547 = vpack.c.b16 %v505, %v503
        %v548 = vpack.c.b16 %v506, %v504
        %v549 = vpack.c.b16 %v509, %v507
        %v550 = vpack.c.b16 %v510, %v508
        %v551 = vpack.c.b16 %v513, %v511
        %v552 = vpack.c.b16 %v514, %v512
        %v553 = vpack.c.b16 %v517, %v515
        %v554 = vpack.c.b16 %v518, %v516
        %v555 = vpack.c.b16 %v521, %v519
        %v556 = vpack.c.b16 %v522, %v520
        %v557 = vpack.c.b16 %v525, %v523
        %v558 = vpack.c.b16 %v526, %v524
        %591 = vmatprep.subr.bf16.mxu0 %v528
        %592 = vmatpush1.bf16.msra.mxu0 %v527
        %593 = vmatprep.subr.bf16.mxu0 %v530
        %594 = vmatpush1.bf16.msra.mxu0 %v529
        %595 = vmatprep.subr.bf16.mxu0 %v532
        %596 = vmatpush1.bf16.msra.mxu0 %v531
        %597 = vmatprep.subr.bf16.mxu0 %v534
        %598 = vmatpush1.bf16.msra.mxu0 %v533
        %599 = vmatprep.subr.bf16.mxu0 %v536
        %600 = vmatpush1.bf16.msra.mxu0 %v535
        %601 = vmatprep.subr.bf16.mxu0 %v538
        %602 = vmatpush1.bf16.msra.mxu0 %v537
        %603 = vmatprep.subr.bf16.mxu0 %v540
        %604 = vmatpush1.bf16.msra.mxu0 %v539
        %605 = vmatprep.subr.bf16.mxu0 %v542
        %606 = vmatpush1.bf16.msra.mxu0 %v541
        %607 = vmatprep.subr.bf16.mxu0 %v544
        %608 = vmatpush1.bf16.msra.mxu0 %v543
        %609 = vmatprep.subr.bf16.mxu0 %v546
        %610 = vmatpush1.bf16.msra.mxu0 %v545
        %611 = vmatprep.subr.bf16.mxu0 %v548
        %612 = vmatpush1.bf16.msra.mxu0 %v547
        %613 = vmatprep.subr.bf16.mxu0 %v550
        %614 = vmatpush1.bf16.msra.mxu0 %v549
        %615 = vmatprep.subr.bf16.mxu0 %v552
        %616 = vmatpush1.bf16.msra.mxu0 %v551
        %617 = vmatprep.subr.bf16.mxu0 %v554
        %618 = vmatpush1.bf16.msra.mxu0 %v553
        %619 = vmatprep.subr.bf16.mxu0 %v556
        %620 = vmatpush1.bf16.msra.mxu0 %v555
        %621 = vmatprep.subr.bf16.mxu0 %v558
        %622 = vmatpush1.bf16.msra.mxu0 %v557
        %623 = vmatprep.mubr.bf16.mxu0 %v386
        %624 = vmatmul.mubr.bf16.gmra.mrb[0].mxu0 %v385
        %v625 = vpop.f32.mrb[0].mxu0
        %v626 = vadd.f32 %v424, %v625
        %v627 = vpop.f32.mrb[0].mxu0
        %v628 = vadd.f32 %v428, %v627
        %v629 = vpop.f32.mrb[0].mxu0
        %v630 = vadd.f32 %v424, %v629
        %v631 = vpop.f32.mrb[0].mxu0
        %v632 = vadd.f32 %v428, %v631
        %633 = vdwg.mxu0
        %v634 = vmul.f32 %v626, 0.5
        %v635 = vmul.f32 %v628, 0.5
        %v636 = vmul.f32 %v630, 0.5
        %v637 = vmul.f32 %v632, 0.5
        %v638 = vmul.f32 %v626, 0.044715
        %v639 = vmul.f32 %v628, 0.044715
        %v640 = vmul.f32 %v630, 0.044715
        %v641 = vmul.f32 %v632, 0.044715
        %v642 = vmul.f32 %v638, %v626
        %v643 = vmul.f32 %v639, %v628
        %v644 = vmul.f32 %v640, %v630
        %v645 = vmul.f32 %v641, %v632
        %v646 = vmul.f32 %v642, %v626
        %v647 = vmul.f32 %v643, %v628
        %v648 = vmul.f32 %v644, %v630
        %v649 = vmul.f32 %v645, %v632
        %v650 = vadd.f32 %v626, %v646
        %v651 = vadd.f32 %v628, %v647
        %v652 = vadd.f32 %v630, %v648
        %v653 = vadd.f32 %v632, %v649
        %v654 = vmul.f32 %v650, 0.7978846
        %v655 = vmul.f32 %v651, 0.7978846
        %v656 = vmul.f32 %v652, 0.7978846
        %v657 = vmul.f32 %v653, 0.7978846
        %v658 = vtanh.pop %v654
        %v659 = vtanh.pop %v655
        %v660 = vtanh.pop %v656
        %v661 = vtanh.pop %v657
        %v662 = vadd.f32 %v658, 1.0
        %v663 = vadd.f32 %v659, 1.0
        %v664 = vadd.f32 %v660, 1.0
        %v665 = vadd.f32 %v661, 1.0
        %v666 = vmul.f32 %v634, %v662
        %v667 = vmul.f32 %v635, %v663
        %v668 = vmul.f32 %v636, %v664
        %v669 = vmul.f32 %v637, %v665
        %v670 = vpack.c.bf16 %v668, %v666
        %v671 = vpack.c.bf16 %v669, %v667
        %v672 = vld [vmem:[#allocation7] sm:$0xff]
        %v673 = vld [vmem:[#allocation7 + $0x8] sm:$0xff]
        %v674 = vld [vmem:[#allocation7 + $0x10] sm:$0xff]
        %v675 = vld [vmem:[#allocation7 + $0x18] sm:$0xff]
        %v676 = vld [vmem:[#allocation7 + $0x20] sm:$0xff]
        %v677 = vld [vmem:[#allocation7 + $0x28] sm:$0xff]
        %v678 = vld [vmem:[#allocation7 + $0x30] sm:$0xff]
        %v679 = vld [vmem:[#allocation7 + $0x38] sm:$0xff]
        %v680 = vld [vmem:[#allocation7 + $0x40] sm:$0xff]
        %v681 = vld [vmem:[#allocation7 + $0x48] sm:$0xff]
        %v682 = vld [vmem:[#allocation7 + $0x50] sm:$0xff]
        %v683 = vld [vmem:[#allocation7 + $0x58] sm:$0xff]
        %v684 = vld [vmem:[#allocation7 + $0x60] sm:$0xff]
        %v685 = vld [vmem:[#allocation7 + $0x68] sm:$0xff]
        %v686 = vld [vmem:[#allocation7 + $0x70] sm:$0xff]
        %v687 = vld [vmem:[#allocation7 + $0x78] sm:$0xff]
        %v688 = vld [vmem:[#allocation7 + $0x80] sm:$0xff]
        %v689 = vld [vmem:[#allocation7 + $0x88] sm:$0xff]
        %v690 = vld [vmem:[#allocation7 + $0x90] sm:$0xff]
        %v691 = vld [vmem:[#allocation7 + $0x98] sm:$0xff]
        %v692 = vld [vmem:[#allocation7 + $0xa0] sm:$0xff]
        %v693 = vld [vmem:[#allocation7 + $0xa8] sm:$0xff]
        %v694 = vld [vmem:[#allocation7 + $0xb0] sm:$0xff]
        %v695 = vld [vmem:[#allocation7 + $0xb8] sm:$0xff]
        %v696 = vld [vmem:[#allocation7 + $0xc0] sm:$0xff]
        %v697 = vld [vmem:[#allocation7 + $0xc8] sm:$0xff]
        %v698 = vld [vmem:[#allocation7 + $0xd0] sm:$0xff]
        %v699 = vld [vmem:[#allocation7 + $0xd8] sm:$0xff]
        %v700 = vld [vmem:[#allocation7 + $0xe0] sm:$0xff]
        %v701 = vld [vmem:[#allocation7 + $0xe8] sm:$0xff]
        %v702 = vld [vmem:[#allocation7 + $0xf0] sm:$0xff]
        %v703 = vld [vmem:[#allocation7 + $0xf8] sm:$0xff]
        %v704 = vld [vmem:[%s4] sm:$0x3]
        %v706 = vlaneseq
        %v707 = vshrl.u32 %v706, 7
        %v708 = vsub.s32 0, %v707
        %v709 = vrot.slane %v704, %v708
        %v710 = vlaneseq
        %v711 = vshrl.u32 %v710, 7
        %v712 = vsub.s32 1, %v711
        %v713 = vrot.slane %v704, %v712
        %v748 = vunpack.c.l.b16 %v672
        %v749 = vunpack.c.h.b16 %v672
        %v750 = vunpack.c.l.b16 %v673
        %v751 = vunpack.c.h.b16 %v673
        %v752 = vunpack.c.l.b16 %v674
        %v753 = vunpack.c.h.b16 %v674
        %v754 = vunpack.c.l.b16 %v675
        %v755 = vunpack.c.h.b16 %v675
        %v756 = vunpack.c.l.b16 %v676
        %v757 = vunpack.c.h.b16 %v676
        %v758 = vunpack.c.l.b16 %v677
        %v759 = vunpack.c.h.b16 %v677
        %v760 = vunpack.c.l.b16 %v678
        %v761 = vunpack.c.h.b16 %v678
        %v762 = vunpack.c.l.b16 %v679
        %v763 = vunpack.c.h.b16 %v679
        %v764 = vunpack.c.l.b16 %v680
        %v765 = vunpack.c.h.b16 %v680
        %v766 = vunpack.c.l.b16 %v681
        %v767 = vunpack.c.h.b16 %v681
        %v768 = vunpack.c.l.b16 %v682
        %v769 = vunpack.c.h.b16 %v682
        %v770 = vunpack.c.l.b16 %v683
        %v771 = vunpack.c.h.b16 %v683
        %v772 = vunpack.c.l.b16 %v684
        %v773 = vunpack.c.h.b16 %v684
        %v774 = vunpack.c.l.b16 %v685
        %v775 = vunpack.c.h.b16 %v685
        %v776 = vunpack.c.l.b16 %v686
        %v777 = vunpack.c.h.b16 %v686
        %v778 = vunpack.c.l.b16 %v687
        %v779 = vunpack.c.h.b16 %v687
        %v780 = vunpack.c.l.b16 %v688
        %v781 = vunpack.c.h.b16 %v688
        %v782 = vunpack.c.l.b16 %v689
        %v783 = vunpack.c.h.b16 %v689
        %v784 = vunpack.c.l.b16 %v690
        %v785 = vunpack.c.h.b16 %v690
        %v786 = vunpack.c.l.b16 %v691
        %v787 = vunpack.c.h.b16 %v691
        %v788 = vunpack.c.l.b16 %v692
        %v789 = vunpack.c.h.b16 %v692
        %v790 = vunpack.c.l.b16 %v693
        %v791 = vunpack.c.h.b16 %v693
        %v792 = vunpack.c.l.b16 %v694
        %v793 = vunpack.c.h.b16 %v694
        %v794 = vunpack.c.l.b16 %v695
        %v795 = vunpack.c.h.b16 %v695
        %v796 = vunpack.c.l.b16 %v696
        %v797 = vunpack.c.h.b16 %v696
        %v798 = vunpack.c.l.b16 %v697
        %v799 = vunpack.c.h.b16 %v697
        %v800 = vunpack.c.l.b16 %v698
        %v801 = vunpack.c.h.b16 %v698
        %v802 = vunpack.c.l.b16 %v699
        %v803 = vunpack.c.h.b16 %v699
        %v804 = vunpack.c.l.b16 %v700
        %v805 = vunpack.c.h.b16 %v700
        %v806 = vunpack.c.l.b16 %v701
        %v807 = vunpack.c.h.b16 %v701
        %v808 = vunpack.c.l.b16 %v702
        %v809 = vunpack.c.h.b16 %v702
        %v810 = vunpack.c.l.b16 %v703
        %v811 = vunpack.c.h.b16 %v703
        %v812 = vpack.c.b16 %v750, %v748
        %v813 = vpack.c.b16 %v751, %v749
        %v814 = vpack.c.b16 %v754, %v752
        %v815 = vpack.c.b16 %v755, %v753
        %v816 = vpack.c.b16 %v758, %v756
        %v817 = vpack.c.b16 %v759, %v757
        %v818 = vpack.c.b16 %v762, %v760
        %v819 = vpack.c.b16 %v763, %v761
        %v820 = vpack.c.b16 %v766, %v764
        %v821 = vpack.c.b16 %v767, %v765
        %v822 = vpack.c.b16 %v770, %v768
        %v823 = vpack.c.b16 %v771, %v769
        %v824 = vpack.c.b16 %v774, %v772
        %v825 = vpack.c.b16 %v775, %v773
        %v826 = vpack.c.b16 %v778, %v776
        %v827 = vpack.c.b16 %v779, %v777
        %v828 = vpack.c.b16 %v782, %v780
        %v829 = vpack.c.b16 %v783, %v781
        %v830 = vpack.c.b16 %v786, %v784
        %v831 = vpack.c.b16 %v787, %v785
        %v832 = vpack.c.b16 %v790, %v788
        %v833 = vpack.c.b16 %v791, %v789
        %v834 = vpack.c.b16 %v794, %v792
        %v835 = vpack.c.b16 %v795, %v793
        %v836 = vpack.c.b16 %v798, %v796
        %v837 = vpack.c.b16 %v799, %v797
        %v838 = vpack.c.b16 %v802, %v800
        %v839 = vpack.c.b16 %v803, %v801
        %v840 = vpack.c.b16 %v806, %v804
        %v841 = vpack.c.b16 %v807, %v805
        %v842 = vpack.c.b16 %v810, %v808
        %v843 = vpack.c.b16 %v811, %v809
        %876 = vmatprep.subr.bf16.mxu0 %v813
        %877 = vmatpush1.bf16.msra.mxu0 %v812
        %878 = vmatprep.subr.bf16.mxu0 %v815
        %879 = vmatpush1.bf16.msra.mxu0 %v814
        %880 = vmatprep.subr.bf16.mxu0 %v817
        %881 = vmatpush1.bf16.msra.mxu0 %v816
        %882 = vmatprep.subr.bf16.mxu0 %v819
        %883 = vmatpush1.bf16.msra.mxu0 %v818
        %884 = vmatprep.subr.bf16.mxu0 %v821
        %885 = vmatpush1.bf16.msra.mxu0 %v820
        %886 = vmatprep.subr.bf16.mxu0 %v823
        %887 = vmatpush1.bf16.msra.mxu0 %v822
        %888 = vmatprep.subr.bf16.mxu0 %v825
        %889 = vmatpush1.bf16.msra.mxu0 %v824
        %890 = vmatprep.subr.bf16.mxu0 %v827
        %891 = vmatpush1.bf16.msra.mxu0 %v826
        %892 = vmatprep.subr.bf16.mxu0 %v829
        %893 = vmatpush1.bf16.msra.mxu0 %v828
        %894 = vmatprep.subr.bf16.mxu0 %v831
        %895 = vmatpush1.bf16.msra.mxu0 %v830
        %896 = vmatprep.subr.bf16.mxu0 %v833
        %897 = vmatpush1.bf16.msra.mxu0 %v832
        %898 = vmatprep.subr.bf16.mxu0 %v835
        %899 = vmatpush1.bf16.msra.mxu0 %v834
        %900 = vmatprep.subr.bf16.mxu0 %v837
        %901 = vmatpush1.bf16.msra.mxu0 %v836
        %902 = vmatprep.subr.bf16.mxu0 %v839
        %903 = vmatpush1.bf16.msra.mxu0 %v838
        %904 = vmatprep.subr.bf16.mxu0 %v841
        %905 = vmatpush1.bf16.msra.mxu0 %v840
        %906 = vmatprep.subr.bf16.mxu0 %v843
        %907 = vmatpush1.bf16.msra.mxu0 %v842
        %908 = vmatprep.mubr.bf16.mxu0 %v671
        %909 = vmatmul.mubr.bf16.gmra.mrb[0].mxu0 %v670
        %v910 = vpop.f32.mrb[0].mxu0
        %v911 = vadd.f32 %v709, %v910
        %v912 = vpop.f32.mrb[0].mxu0
        %v913 = vadd.f32 %v713, %v912
        %v914 = vpop.f32.mrb[0].mxu0
        %v915 = vadd.f32 %v709, %v914
        %v916 = vpop.f32.mrb[0].mxu0
        %v917 = vadd.f32 %v713, %v916
        %918 = vdwg.mxu0
        %v919 = vpack.c.bf16 %v915, %v911
        %v920 = vpack.c.bf16 %v917, %v913
        %v921 = vld [vmem:[%s338] sm:$0xff]
        %v922 = vld [vmem:[%s338 + $0x8] sm:$0xff]
        %v923 = vld [vmem:[%s338 + $0x10] sm:$0xff]
        %v924 = vld [vmem:[%s338 + $0x18] sm:$0xff]
        %v925 = vld [vmem:[%s338 + $0x20] sm:$0xff]
        %v926 = vld [vmem:[%s338 + $0x28] sm:$0xff]
        %v927 = vld [vmem:[%s338 + $0x30] sm:$0xff]
        %v928 = vld [vmem:[%s338 + $0x38] sm:$0xff]
        %v929 = vld [vmem:[%s338 + $0x40] sm:$0xff]
        %v930 = vld [vmem:[%s338 + $0x48] sm:$0xff]
        %v931 = vld [vmem:[%s338 + $0x50] sm:$0xff]
        %v932 = vld [vmem:[%s338 + $0x58] sm:$0xff]
        %v933 = vld [vmem:[%s338 + $0x60] sm:$0xff]
        %v934 = vld [vmem:[%s338 + $0x68] sm:$0xff]
        %v935 = vld [vmem:[%s338 + $0x70] sm:$0xff]
        %v936 = vld [vmem:[%s338 + $0x78] sm:$0xff]
        %v953 = vunpack.c.l.b16 %v921
        %v954 = vunpack.c.h.b16 %v921
        %v955 = vunpack.c.l.b16 %v922
        %v956 = vunpack.c.h.b16 %v922
        %v957 = vunpack.c.l.b16 %v923
        %v958 = vunpack.c.h.b16 %v923
        %v959 = vunpack.c.l.b16 %v924
        %v960 = vunpack.c.h.b16 %v924
        %v961 = vunpack.c.l.b16 %v925
        %v962 = vunpack.c.h.b16 %v925
        %v963 = vunpack.c.l.b16 %v926
        %v964 = vunpack.c.h.b16 %v926
        %v965 = vunpack.c.l.b16 %v927
        %v966 = vunpack.c.h.b16 %v927
        %v967 = vunpack.c.l.b16 %v928
        %v968 = vunpack.c.h.b16 %v928
        %v969 = vunpack.c.l.b16 %v929
        %v970 = vunpack.c.h.b16 %v929
        %v971 = vunpack.c.l.b16 %v930
        %v972 = vunpack.c.h.b16 %v930
        %v973 = vunpack.c.l.b16 %v931
        %v974 = vunpack.c.h.b16 %v931
        %v975 = vunpack.c.l.b16 %v932
        %v976 = vunpack.c.h.b16 %v932
        %v977 = vunpack.c.l.b16 %v933
        %v978 = vunpack.c.h.b16 %v933
        %v979 = vunpack.c.l.b16 %v934
        %v980 = vunpack.c.h.b16 %v934
        %v981 = vunpack.c.l.b16 %v935
        %v982 = vunpack.c.h.b16 %v935
        %v983 = vunpack.c.l.b16 %v936
        %v984 = vunpack.c.h.b16 %v936
        %v985 = vpack.c.b16 %v955, %v953
        %v986 = vpack.c.b16 %v956, %v954
        %v987 = vpack.c.b16 %v959, %v957
        %v988 = vpack.c.b16 %v960, %v958
        %v989 = vpack.c.b16 %v963, %v961
        %v990 = vpack.c.b16 %v964, %v962
        %v991 = vpack.c.b16 %v967, %v965
        %v992 = vpack.c.b16 %v968, %v966
        %v993 = vpack.c.b16 %v971, %v969
        %v994 = vpack.c.b16 %v972, %v970
        %v995 = vpack.c.b16 %v975, %v973
        %v996 = vpack.c.b16 %v976, %v974
        %v997 = vpack.c.b16 %v979, %v977
        %v998 = vpack.c.b16 %v980, %v978
        %v999 = vpack.c.b16 %v983, %v981
        %v1000 = vpack.c.b16 %v984, %v982
        %1017 = vmatprep.subr.bf16.mxu0 %v986
        %1018 = vmatpush1.bf16.xpose.msra.mxu0 %v985
        %1019 = vmatprep.subr.bf16.mxu0 %v988
        %1020 = vmatpush1.bf16.xpose.msra.mxu0 %v987
        %1021 = vmatprep.subr.bf16.mxu0 %v990
        %1022 = vmatpush1.bf16.xpose.msra.mxu0 %v989
        %1023 = vmatprep.subr.bf16.mxu0 %v992
        %1024 = vmatpush1.bf16.xpose.msra.mxu0 %v991
        %1025 = vmatprep.subr.bf16.mxu0 %v994
        %1026 = vmatpush1.bf16.xpose.msra.mxu0 %v993
        %1027 = vmatprep.subr.bf16.mxu0 %v996
        %1028 = vmatpush1.bf16.xpose.msra.mxu0 %v995
        %1029 = vmatprep.subr.bf16.mxu0 %v998
        %1030 = vmatpush1.bf16.xpose.msra.mxu0 %v997
        %1031 = vmatprep.subr.bf16.mxu0 %v1000
        %1032 = vmatpush1.bf16.xpose.msra.mxu0 %v999
        %1033 = vmatprep.subr.bf16.mxu0 0
        %1034 = vmatpush1.bf16.xpose.msra.mxu0 0
        %1035 = vmatprep.subr.bf16.mxu0 0
        %1036 = vmatpush1.bf16.xpose.msra.mxu0 0
        %1037 = vmatprep.subr.bf16.mxu0 0
        %1038 = vmatpush1.bf16.xpose.msra.mxu0 0
        %1039 = vmatprep.subr.bf16.mxu0 0
        %1040 = vmatpush1.bf16.xpose.msra.mxu0 0
        %1041 = vmatprep.subr.bf16.mxu0 0
        %1042 = vmatpush1.bf16.xpose.msra.mxu0 0
        %1043 = vmatprep.subr.bf16.mxu0 0
        %1044 = vmatpush1.bf16.xpose.msra.mxu0 0
        %1045 = vmatprep.subr.bf16.mxu0 0
        %1046 = vmatpush1.bf16.xpose.msra.mxu0 0
        %1047 = vmatprep.subr.bf16.mxu0 0
        %1048 = vmatpush1.bf16.xpose.msra.mxu0 0
        %1049 = vmatprep.mubr.bf16.mxu0 %v920
        %1050 = vmatmul.mubr.bf16.gmra.mrb[0].mxu0 %v919
        %v1051 = vpop.f32.mrb[0].mxu0
        %v1052 = vadd.f32 0.0, %v1051
        %v1053 = vpop.f32.mrb[0].mxu0
        %v1054 = vpop.f32.mrb[0].mxu0
        %v1055 = vadd.f32 0.0, %v1054
        %v1056 = vpop.f32.mrb[0].mxu0
        %1057 = vdwg.mxu0
        %v1058 = vld [vmem:[%s379] sm:$0x1]
        %vm1059 = vcmp.gt.f32.partialorder %v1058, 0.5
        %v1060 = vsel %vm1059, 1, 0
        %v1061 = vlaneseq
        %v1062 = vshrl.u32 %v1061, 7
        %v1063 = vsub.s32 0, %v1062
        %v1064 = vrot.slane %v1060, %v1063
        %vm1065 = vcmp.eq.s32.totalorder %v1064, 1
        %v1066 = vsel %vm1065, %v1052, -inf
        %v1067 = vsel %vm1065, %v1055, -inf
        %1068 = vst [vmem:[%s376] sm:$0xff] %v1066
        %1069 = vst [vmem:[%s376 + $0x10] sm:$0xff] %v1067
        %1070 = vst [vmem:[%s376 + $0x8] sm:$0xff] -inf
        %1071 = vst [vmem:[%s376 + $0x18] sm:$0xff] -inf
        %s1072 = sand.u32 %s198, 1
        %s1073 = scalar_lea.sflag [#allocation4], %s1072
        %s1074 = sand.u32 %s198, 1
        %s1075 = smul.addr %s1074, 32
        %s1076 = scalar_lea.vmem [#allocation10], %s1075
        // Predicated region
        $region65: #{tpu_custom_call.1} parent=47 // pred_check
          %p1077 = pneg %p208
        $region66: #{tpu_custom_call.1} parent=47 // pred_check_branch
          %1079 = sbr.rel (%p1077) target = $region68
        $region67: #{tpu_custom_call.1} parent=47 // pred_region
          %s1081 = ssub.s32 512, 512
          %1082 = vsyncadd %s1073, %s1081
          %s1083 = smul.addr %s28, 4
          %s1084 = smul.addr %s1083, 128
          %s1085 = scalar_lea.hbm %s7, %s1084
          %s1086 = sshll.u32 %s1076, 4
          %s1087 = int_to_ptr.vmem [resolvable:$true] %s1086
          %1092 = dma.vmem_to_hbm [thread:$0]  %s1087, 512, %s1085, %s1073, 256, 256, 16
        $region68: #{tpu_custom_call.1} parent=47 // pred_fallthru
          _
      $region48: #{tpu_custom_call.1} parent=5 // pred_fallthru
        _
      %p1093 = scmp.le.s32.totalorder 2, %s23
      // Predicated region
      $region69: #{tpu_custom_call.1} parent=5 // pred_check
        %p1094 = pneg %p1093
      $region70: #{tpu_custom_call.1} parent=5 // pred_check_branch
        %1096 = sbr.rel (%p1094) target = $region72
      $region71: #{tpu_custom_call.1} parent=5 // pred_region
        %s1097 = ssub.s32 %s23, 2
        // Predicated region
        $region73: #{tpu_custom_call.1} parent=71 // pred_check
          %p1098 = pneg %p214
        $region74: #{tpu_custom_call.1} parent=71 // pred_check_branch
          %1100 = sbr.rel (%p1098) target = $region76
        $region75: #{tpu_custom_call.1} parent=71 // pred_region
          %s1101 = sand.u32 %s199, 1
          %s1102 = scalar_lea.sflag [#allocation4], %s1101
          %s1103 = sand.u32 %s199, 1
          %s1104 = smul.addr %s1103, 32
          %s1105 = scalar_lea.vmem [#allocation10], %s1104
          %1106 = dma.done %s1102, 512
        $region76: #{tpu_custom_call.1} parent=71 // pred_fallthru
          _
      $region72: #{tpu_custom_call.1} parent=5 // pred_fallthru
        _
    $region6: #{tpu_custom_call.1} parent=1 // loop_footer
      %s27 = sadd.s32 1, %s23
    $region7: #{tpu_custom_call.1} parent=1 // loop_footer_branch
      %22 = sbr.rel target = $region3
    $region8: #{tpu_custom_call.1} parent=1 // loop_exit
      _
    %1107 = vsyncpa [#allocation3], 1
    %s1108 = scalar_lea.sflag [#allocation3], 1
    %1109 = vsyncpa %s1108, 1
    %1110 = vsyncpa [#allocation6], 1
    %1111 = vsyncpa [#allocation9], 1
    %s1112 = scalar_lea.sflag [#allocation9], 1
    %1113 = vsyncpa %s1112, 1
    %1114 = vsyncpa [#allocation4], 1
    %s1115 = scalar_lea.sflag [#allocation4], 1
    %1116 = vsyncpa %s1115, 1

</llo_original>
